<compile_context>
chip_gen: v7x
topology: tpu7x:2x2x1
jax: 0.10.0
libtpu: 0.0.40
codegen_flags: <defaults>
</compile_context>

<pallas_src>
import jax
import jax.numpy as jnp
from jax.experimental import pallas as pl
from jax.experimental.pallas import tpu as pltpu

NUM_CAT = 21       # categorical columns used by the module (x[:, :21])
FC_C_OUT = 8       # fc_c: Linear(1, 8)
OUT_DIM = 32       # fc:   Linear(D_emb + 8, 32)
NEG_SLOPE = 0.01   # nn.LeakyReLU(negative_slope=0.01)


def _leaky(v):
    return jnp.where(v > 0, v, NEG_SLOPE * v)


def _metadata_encoder_kernel(x_ref, offs_ref, t_ref, wc1_ref, bc1_ref, bfc_ref,
                             out_ref):
    # x_ref:    (TB, 22)     f32  cols 0..20 categorical indices, col 21 continuous
    # offs_ref: (1, 21)      i32  row offset of each embedding block inside T
    # t_ref:    (N_pad, 32)  f32  stacked folded tables; last 8 rows = W_fc cont cols^T
    # wc1_ref:  (1, 8)       f32  fc_c weight (row);  bc1_ref: (1, 8) fc_c bias
    # bfc_ref:  (1, 32)      f32  fc bias
    # out_ref:  (TB, 32)     f32
    x = x_ref[...]
    tb = x.shape[0]
    n_pad = t_ref.shape[0]
    cont_base = n_pad - FC_C_OUT                       # static row of cont block in T

    # global row index of each categorical feature inside the stacked table T
    idx = x[:, :NUM_CAT].astype(jnp.int32) + offs_ref[...]            # (TB, 21) i32

    # continuous branch: leaky_relu(x_cont @ Wc1^T + bc1) -> (TB, 8)
    cont = x[:, NUM_CAT:NUM_CAT + 1]                                   # (TB, 1)
    c8 = _leaky(cont * wc1_ref[...] + bc1_ref[...])                    # (TB, 8)

    # lane-dense selection matrix M (TB, N_pad):
    #   one-hot rows for the 21 categorical features, and the 8 continuous
    #   activations placed in the last 8 lanes -> whole layer is one matmul.
    lanes = jax.lax.broadcasted_iota(jnp.int32, (tb, n_pad), 1)        # (TB, N_pad)
    m = jnp.zeros((tb, n_pad), jnp.float32)
    for j in range(NUM_CAT):                                           # 21 VPU compares
        m = m + jnp.where(lanes == idx[:, j:j + 1], 1.0, 0.0)
    for j in range(FC_C_OUT):                                          # 8 VPU selects
        m = m + jnp.where(lanes == cont_base + j, c8[:, j:j + 1], 0.0)

    # one MXU matmul covers embeddings + fc (both branches), then bias + leaky.
    pre = jnp.dot(m, t_ref[...], preferred_element_type=jnp.float32)   # (TB, 32)
    out_ref[...] = _leaky(pre + bfc_ref[...])


def prepare_params(emb_tables, w_fc, b_fc, w_fcc, b_fcc):
    """One-time fold of embedding tables + fc weight into a single stacked table."""
    dims = [int(t.shape[1]) for t in emb_tables]
    nums = [int(t.shape[0]) for t in emb_tables]
    d_emb = sum(dims)

    # fold: T_i = E_i @ W_fc[:, block_i].T  -> stack along rows
    t_blocks, col = [], 0
    for tbl, d in zip(emb_tables, dims):
        t_blocks.append(tbl.astype(jnp.float32) @ w_fc[:, col:col + d].T)  # (num_i, 32)
        col += d
    t_emb = jnp.concatenate(t_blocks, axis=0)                          # (N_total, 32)
    n_total = t_emb.shape[0]

    # pad to a multiple of 128 rows, reserving the LAST 8 rows for the continuous
    # branch columns of W_fc (transposed), so everything is one matmul.
    n_pad = ((n_total + FC_C_OUT + 127) // 128) * 128
    wct = w_fc[:, d_emb:d_emb + FC_C_OUT].T                            # (8, 32)
    t = jnp.concatenate(
        [t_emb,
         jnp.zeros((n_pad - n_total - FC_C_OUT, OUT_DIM), jnp.float32),
         wct.astype(jnp.float32)],
        axis=0)                                                         # (N_pad, 32)

    offs, acc = [], 0
    for n in nums:
        offs.append(acc)
        acc += n

    return dict(
        offs=jnp.asarray(offs, jnp.int32).reshape(1, NUM_CAT),
        t=t.astype(jnp.float32),                                       # (N_pad, 32)
        wc1=w_fcc[:, 0].reshape(1, FC_C_OUT).astype(jnp.float32),      # (1, 8)
        bc1=b_fcc.reshape(1, FC_C_OUT).astype(jnp.float32),            # (1, 8)
        bfc=b_fc.reshape(1, OUT_DIM).astype(jnp.float32),              # (1, 32)
    )


def metadata_encoder_forward(x, params, *, block_b=8):
    """x: (B, 22) float (cols 0..20: category indices as float, col 21: continuous)."""
    B = x.shape[0]
    if B % block_b != 0:
        block_b = B                      # fall back to whole batch in one step
    n_pad = params["t"].shape[0]

    # TODO(synk): the torch forward's host-side ValueError on out-of-range indices is a
    # data-dependent .item() check with no in-kernel equivalent; OOB indices here simply
    # select a zero row (contribute nothing).
    grid_spec = pltpu.PrefetchScalarGridSpec(
        num_scalar_prefetch=0,
        grid=(B // block_b,),
        in_specs=[
            pl.BlockSpec((block_b, NUM_CAT + 1), lambda i: (i, 0)),    # x rows
            pl.BlockSpec((1, NUM_CAT), lambda i: (0, 0)),              # offsets
            pl.BlockSpec((n_pad, OUT_DIM), lambda i: (0, 0)),          # folded table T
            pl.BlockSpec((1, FC_C_OUT), lambda i: (0, 0)),             # fc_c weight row
            pl.BlockSpec((1, FC_C_OUT), lambda i: (0, 0)),             # fc_c bias
            pl.BlockSpec((1, OUT_DIM), lambda i: (0, 0)),              # fc bias
        ],
        out_specs=pl.BlockSpec((block_b, OUT_DIM), lambda i: (i, 0)),
    )
    return pl.pallas_call(
        _metadata_encoder_kernel,
        out_shape=jax.ShapeDtypeStruct((B, OUT_DIM), jnp.float32),
        grid_spec=grid_spec,
        compiler_params=pltpu.CompilerParams(dimension_semantics=("parallel",)),
    )(x.astype(jnp.float32), params["offs"], params["t"], params["wc1"],
      params["bc1"], params["bfc"])


def _reference(x, emb_tables, w_fc, b_fc, w_fcc, b_fcc):
    """Pure-JAX reference mirroring the torch forward literally."""
    embs = [jnp.take(tbl, x[:, i].astype(jnp.int32), axis=0)
            for i, tbl in enumerate(emb_tables)]
    cat = jnp.concatenate(embs, axis=1)
    cont = x[:, NUM_CAT:NUM_CAT + 1].astype(jnp.float32)
    c8 = _leaky(cont @ w_fcc.T + b_fcc)
    comb = jnp.concatenate([cat, c8], axis=1)
    return _leaky(comb @ w_fc.T + b_fc)


if __name__ == "__main__":
    # 21 categorical features (num_categories, emb_dim) + 1 continuous feature
    emb_sizes = [(6, 4)] * 10 + [(5, 3)] * 11
    B = 16

    key = jax.random.PRNGKey(0)
    keys = jax.random.split(key, len(emb_sizes) + 6)

    # deterministic parameters (torch module __init__ shapes)
    emb_tables = [jax.random.normal(keys[i], (n, d), jnp.float32)
                  for i, (n, d) in enumerate(emb_sizes)]
    kwc, kbc, kw, kb, kxi, kxc = keys[len(emb_sizes):]
    d_emb = sum(d for _, d in emb_sizes)
    w_fcc = jax.random.normal(kwc, (FC_C_OUT, 1), jnp.float32) * 0.5   # fc_c weight (8,1)
    b_fcc = jax.random.normal(kbc, (FC_C_OUT,), jnp.float32) * 0.1     # fc_c bias
    w_fc = jax.random.normal(kw, (OUT_DIM, d_emb + FC_C_OUT), jnp.float32) * 0.1
    b_fc = jax.random.normal(kb, (OUT_DIM,), jnp.float32) * 0.1

    # input x: (B, 22) — cols 0..20 valid category indices (as float), col 21 continuous
    max_nums = jnp.array([n for n, _ in emb_sizes], jnp.int32)
    cat_idx = jax.random.randint(kxi, (B, NUM_CAT), 0, max_nums[None, :])
    cont = jax.random.normal(kxc, (B, 1), jnp.float32)
    x = jnp.concatenate([cat_idx.astype(jnp.float32), cont], axis=1)

    params = prepare_params(emb_tables, w_fc, b_fc, w_fcc, b_fcc)      # one-time fold
    out = metadata_encoder_forward(x, params, block_b=8)
    out = jax.block_until_ready(out)

    ref = _reference(x, emb_tables, w_fc, b_fc, w_fcc, b_fcc)
    assert out.shape == (B, OUT_DIM)
    assert jnp.allclose(out, ref, atol=1e-4, rtol=1e-4), \
        float(jnp.max(jnp.abs(out - ref)))

    print("KERNEL_OK")
</pallas_src>

<mosaic_0001>
module attributes {stable_mosaic.version = 11 : i64} {
  func.func @_metadata_encoder_kernel(%arg0: i32, %arg1: memref<8x22xf32, #tpu.memory_space<vmem>>, %arg2: memref<1x21xi32, #tpu.memory_space<vmem>>, %arg3: memref<128x32xf32, #tpu.memory_space<vmem>>, %arg4: memref<1x8xf32, #tpu.memory_space<vmem>>, %arg5: memref<1x8xf32, #tpu.memory_space<vmem>>, %arg6: memref<1x32xf32, #tpu.memory_space<vmem>>, %arg7: memref<8x32xf32, #tpu.memory_space<vmem>>) attributes {dimension_semantics = [#tpu.dimension_semantics<parallel>], iteration_bounds = array<i64: 2>, scalar_prefetch = 0 : i64, scratch_operands = 0 : i64, tpu.core_type = #tpu.core_type<tc>, window_params = [{transform_indices = @transform_0, window_bounds = array<i64: 8, 22>}, {pipeline_mode = #tpu.pipeline_mode<synchronous>, transform_indices = @transform_1, window_bounds = array<i64: 1, 21>}, {pipeline_mode = #tpu.pipeline_mode<synchronous>, transform_indices = @transform_2, window_bounds = array<i64: 128, 32>}, {pipeline_mode = #tpu.pipeline_mode<synchronous>, transform_indices = @transform_3, window_bounds = array<i64: 1, 8>}, {pipeline_mode = #tpu.pipeline_mode<synchronous>, transform_indices = @transform_4, window_bounds = array<i64: 1, 8>}, {pipeline_mode = #tpu.pipeline_mode<synchronous>, transform_indices = @transform_5, window_bounds = array<i64: 1, 32>}, {transform_indices = @transform_6, window_bounds = array<i64: 8, 32>}]} {
    %c0 = arith.constant 0 : index
    %c0_0 = arith.constant 0 : index
    %0 = vector.load %arg1[%c0, %c0_0] : memref<8x22xf32, #tpu.memory_space<vmem>>, vector<8x22xf32>
    %1 = vector.extract_strided_slice %0 {offsets = [0, 0], sizes = [8, 21], strides = [1, 1]} : vector<8x22xf32> to vector<8x21xf32>
    %2 = arith.fptosi %1 : vector<8x21xf32> to vector<8x21xi32>
    %c0_1 = arith.constant 0 : index
    %c0_2 = arith.constant 0 : index
    %3 = vector.load %arg2[%c0_1, %c0_2] : memref<1x21xi32, #tpu.memory_space<vmem>>, vector<1x21xi32>
    %4 = vector.broadcast %3 : vector<1x21xi32> to vector<8x21xi32>
    %5 = arith.addi %2, %4 : vector<8x21xi32>
    %6 = vector.extract_strided_slice %0 {offsets = [0, 21], sizes = [8, 1], strides = [1, 1]} : vector<8x22xf32> to vector<8x1xf32>
    %c0_3 = arith.constant 0 : index
    %c0_4 = arith.constant 0 : index
    %7 = vector.load %arg4[%c0_3, %c0_4] : memref<1x8xf32, #tpu.memory_space<vmem>>, vector<1x8xf32>
    %8 = vector.broadcast %6 : vector<8x1xf32> to vector<8x8xf32>
    %9 = vector.broadcast %7 : vector<1x8xf32> to vector<8x8xf32>
    %10 = arith.mulf %8, %9 : vector<8x8xf32>
    %c0_5 = arith.constant 0 : index
    %c0_6 = arith.constant 0 : index
    %11 = vector.load %arg5[%c0_5, %c0_6] : memref<1x8xf32, #tpu.memory_space<vmem>>, vector<1x8xf32>
    %12 = vector.broadcast %11 : vector<1x8xf32> to vector<8x8xf32>
    %13 = arith.addf %10, %12 : vector<8x8xf32>
    %cst = arith.constant 0.000000e+00 : f32
    %14 = vector.broadcast %cst : f32 to vector<8x8xf32>
    %15 = arith.cmpf ogt, %13, %14 : vector<8x8xf32>
    %cst_7 = arith.constant 0.00999999977 : f32
    %16 = vector.broadcast %cst_7 : f32 to vector<8x8xf32>
    %17 = arith.mulf %16, %13 : vector<8x8xf32>
    %18 = arith.select %15, %13, %17 : vector<8x8xi1>, vector<8x8xf32>
    %19 = tpu.iota {dimensions = array<i32: 1>} : vector<8x128xi32>
    %cst_8 = arith.constant 0.000000e+00 : f32
    %20 = vector.broadcast %cst_8 : f32 to vector<8x128xf32>
    %21 = vector.extract_strided_slice %5 {offsets = [0, 0], sizes = [8, 1], strides = [1, 1]} : vector<8x21xi32> to vector<8x1xi32>
    %22 = vector.broadcast %21 : vector<8x1xi32> to vector<8x128xi32>
    %23 = arith.cmpi eq, %19, %22 : vector<8x128xi32>
    %cst_9 = arith.constant 1.000000e+00 : f32
    %cst_10 = arith.constant 0.000000e+00 : f32
    %24 = vector.broadcast %cst_9 : f32 to vector<8x128xf32>
    %25 = vector.broadcast %cst_10 : f32 to vector<8x128xf32>
    %26 = arith.select %23, %24, %25 : vector<8x128xi1>, vector<8x128xf32>
    %27 = arith.addf %20, %26 : vector<8x128xf32>
    %28 = vector.extract_strided_slice %5 {offsets = [0, 1], sizes = [8, 1], strides = [1, 1]} : vector<8x21xi32> to vector<8x1xi32>
    %29 = vector.broadcast %28 : vector<8x1xi32> to vector<8x128xi32>
    %30 = arith.cmpi eq, %19, %29 : vector<8x128xi32>
    %cst_11 = arith.constant 1.000000e+00 : f32
    %cst_12 = arith.constant 0.000000e+00 : f32
    %31 = vector.broadcast %cst_11 : f32 to vector<8x128xf32>
    %32 = vector.broadcast %cst_12 : f32 to vector<8x128xf32>
    %33 = arith.select %30, %31, %32 : vector<8x128xi1>, vector<8x128xf32>
    %34 = arith.addf %27, %33 : vector<8x128xf32>
    %35 = vector.extract_strided_slice %5 {offsets = [0, 2], sizes = [8, 1], strides = [1, 1]} : vector<8x21xi32> to vector<8x1xi32>
    %36 = vector.broadcast %35 : vector<8x1xi32> to vector<8x128xi32>
    %37 = arith.cmpi eq, %19, %36 : vector<8x128xi32>
    %cst_13 = arith.constant 1.000000e+00 : f32
    %cst_14 = arith.constant 0.000000e+00 : f32
    %38 = vector.broadcast %cst_13 : f32 to vector<8x128xf32>
    %39 = vector.broadcast %cst_14 : f32 to vector<8x128xf32>
    %40 = arith.select %37, %38, %39 : vector<8x128xi1>, vector<8x128xf32>
    %41 = arith.addf %34, %40 : vector<8x128xf32>
    %42 = vector.extract_strided_slice %5 {offsets = [0, 3], sizes = [8, 1], strides = [1, 1]} : vector<8x21xi32> to vector<8x1xi32>
    %43 = vector.broadcast %42 : vector<8x1xi32> to vector<8x128xi32>
    %44 = arith.cmpi eq, %19, %43 : vector<8x128xi32>
    %cst_15 = arith.constant 1.000000e+00 : f32
    %cst_16 = arith.constant 0.000000e+00 : f32
    %45 = vector.broadcast %cst_15 : f32 to vector<8x128xf32>
    %46 = vector.broadcast %cst_16 : f32 to vector<8x128xf32>
    %47 = arith.select %44, %45, %46 : vector<8x128xi1>, vector<8x128xf32>
    %48 = arith.addf %41, %47 : vector<8x128xf32>
    %49 = vector.extract_strided_slice %5 {offsets = [0, 4], sizes = [8, 1], strides = [1, 1]} : vector<8x21xi32> to vector<8x1xi32>
    %50 = vector.broadcast %49 : vector<8x1xi32> to vector<8x128xi32>
    %51 = arith.cmpi eq, %19, %50 : vector<8x128xi32>
    %cst_17 = arith.constant 1.000000e+00 : f32
    %cst_18 = arith.constant 0.000000e+00 : f32
    %52 = vector.broadcast %cst_17 : f32 to vector<8x128xf32>
    %53 = vector.broadcast %cst_18 : f32 to vector<8x128xf32>
    %54 = arith.select %51, %52, %53 : vector<8x128xi1>, vector<8x128xf32>
    %55 = arith.addf %48, %54 : vector<8x128xf32>
    %56 = vector.extract_strided_slice %5 {offsets = [0, 5], sizes = [8, 1], strides = [1, 1]} : vector<8x21xi32> to vector<8x1xi32>
    %57 = vector.broadcast %56 : vector<8x1xi32> to vector<8x128xi32>
    %58 = arith.cmpi eq, %19, %57 : vector<8x128xi32>
    %cst_19 = arith.constant 1.000000e+00 : f32
    %cst_20 = arith.constant 0.000000e+00 : f32
    %59 = vector.broadcast %cst_19 : f32 to vector<8x128xf32>
    %60 = vector.broadcast %cst_20 : f32 to vector<8x128xf32>
    %61 = arith.select %58, %59, %60 : vector<8x128xi1>, vector<8x128xf32>
    %62 = arith.addf %55, %61 : vector<8x128xf32>
    %63 = vector.extract_strided_slice %5 {offsets = [0, 6], sizes = [8, 1], strides = [1, 1]} : vector<8x21xi32> to vector<8x1xi32>
    %64 = vector.broadcast %63 : vector<8x1xi32> to vector<8x128xi32>
    %65 = arith.cmpi eq, %19, %64 : vector<8x128xi32>
    %cst_21 = arith.constant 1.000000e+00 : f32
    %cst_22 = arith.constant 0.000000e+00 : f32
    %66 = vector.broadcast %cst_21 : f32 to vector<8x128xf32>
    %67 = vector.broadcast %cst_22 : f32 to vector<8x128xf32>
    %68 = arith.select %65, %66, %67 : vector<8x128xi1>, vector<8x128xf32>
    %69 = arith.addf %62, %68 : vector<8x128xf32>
    %70 = vector.extract_strided_slice %5 {offsets = [0, 7], sizes = [8, 1], strides = [1, 1]} : vector<8x21xi32> to vector<8x1xi32>
    %71 = vector.broadcast %70 : vector<8x1xi32> to vector<8x128xi32>
    %72 = arith.cmpi eq, %19, %71 : vector<8x128xi32>
    %cst_23 = arith.constant 1.000000e+00 : f32
    %cst_24 = arith.constant 0.000000e+00 : f32
    %73 = vector.broadcast %cst_23 : f32 to vector<8x128xf32>
    %74 = vector.broadcast %cst_24 : f32 to vector<8x128xf32>
    %75 = arith.select %72, %73, %74 : vector<8x128xi1>, vector<8x128xf32>
    %76 = arith.addf %69, %75 : vector<8x128xf32>
    %77 = vector.extract_strided_slice %5 {offsets = [0, 8], sizes = [8, 1], strides = [1, 1]} : vector<8x21xi32> to vector<8x1xi32>
    %78 = vector.broadcast %77 : vector<8x1xi32> to vector<8x128xi32>
    %79 = arith.cmpi eq, %19, %78 : vector<8x128xi32>
    %cst_25 = arith.constant 1.000000e+00 : f32
    %cst_26 = arith.constant 0.000000e+00 : f32
    %80 = vector.broadcast %cst_25 : f32 to vector<8x128xf32>
    %81 = vector.broadcast %cst_26 : f32 to vector<8x128xf32>
    %82 = arith.select %79, %80, %81 : vector<8x128xi1>, vector<8x128xf32>
    %83 = arith.addf %76, %82 : vector<8x128xf32>
    %84 = vector.extract_strided_slice %5 {offsets = [0, 9], sizes = [8, 1], strides = [1, 1]} : vector<8x21xi32> to vector<8x1xi32>
    %85 = vector.broadcast %84 : vector<8x1xi32> to vector<8x128xi32>
    %86 = arith.cmpi eq, %19, %85 : vector<8x128xi32>
    %cst_27 = arith.constant 1.000000e+00 : f32
    %cst_28 = arith.constant 0.000000e+00 : f32
    %87 = vector.broadcast %cst_27 : f32 to vector<8x128xf32>
    %88 = vector.broadcast %cst_28 : f32 to vector<8x128xf32>
    %89 = arith.select %86, %87, %88 : vector<8x128xi1>, vector<8x128xf32>
    %90 = arith.addf %83, %89 : vector<8x128xf32>
    %91 = vector.extract_strided_slice %5 {offsets = [0, 10], sizes = [8, 1], strides = [1, 1]} : vector<8x21xi32> to vector<8x1xi32>
    %92 = vector.broadcast %91 : vector<8x1xi32> to vector<8x128xi32>
    %93 = arith.cmpi eq, %19, %92 : vector<8x128xi32>
    %cst_29 = arith.constant 1.000000e+00 : f32
    %cst_30 = arith.constant 0.000000e+00 : f32
    %94 = vector.broadcast %cst_29 : f32 to vector<8x128xf32>
    %95 = vector.broadcast %cst_30 : f32 to vector<8x128xf32>
    %96 = arith.select %93, %94, %95 : vector<8x128xi1>, vector<8x128xf32>
    %97 = arith.addf %90, %96 : vector<8x128xf32>
    %98 = vector.extract_strided_slice %5 {offsets = [0, 11], sizes = [8, 1], strides = [1, 1]} : vector<8x21xi32> to vector<8x1xi32>
    %99 = vector.broadcast %98 : vector<8x1xi32> to vector<8x128xi32>
    %100 = arith.cmpi eq, %19, %99 : vector<8x128xi32>
    %cst_31 = arith.constant 1.000000e+00 : f32
    %cst_32 = arith.constant 0.000000e+00 : f32
    %101 = vector.broadcast %cst_31 : f32 to vector<8x128xf32>
    %102 = vector.broadcast %cst_32 : f32 to vector<8x128xf32>
    %103 = arith.select %100, %101, %102 : vector<8x128xi1>, vector<8x128xf32>
    %104 = arith.addf %97, %103 : vector<8x128xf32>
    %105 = vector.extract_strided_slice %5 {offsets = [0, 12], sizes = [8, 1], strides = [1, 1]} : vector<8x21xi32> to vector<8x1xi32>
    %106 = vector.broadcast %105 : vector<8x1xi32> to vector<8x128xi32>
    %107 = arith.cmpi eq, %19, %106 : vector<8x128xi32>
    %cst_33 = arith.constant 1.000000e+00 : f32
    %cst_34 = arith.constant 0.000000e+00 : f32
    %108 = vector.broadcast %cst_33 : f32 to vector<8x128xf32>
    %109 = vector.broadcast %cst_34 : f32 to vector<8x128xf32>
    %110 = arith.select %107, %108, %109 : vector<8x128xi1>, vector<8x128xf32>
    %111 = arith.addf %104, %110 : vector<8x128xf32>
    %112 = vector.extract_strided_slice %5 {offsets = [0, 13], sizes = [8, 1], strides = [1, 1]} : vector<8x21xi32> to vector<8x1xi32>
    %113 = vector.broadcast %112 : vector<8x1xi32> to vector<8x128xi32>
    %114 = arith.cmpi eq, %19, %113 : vector<8x128xi32>
    %cst_35 = arith.constant 1.000000e+00 : f32
    %cst_36 = arith.constant 0.000000e+00 : f32
    %115 = vector.broadcast %cst_35 : f32 to vector<8x128xf32>
    %116 = vector.broadcast %cst_36 : f32 to vector<8x128xf32>
    %117 = arith.select %114, %115, %116 : vector<8x128xi1>, vector<8x128xf32>
    %118 = arith.addf %111, %117 : vector<8x128xf32>
    %119 = vector.extract_strided_slice %5 {offsets = [0, 14], sizes = [8, 1], strides = [1, 1]} : vector<8x21xi32> to vector<8x1xi32>
    %120 = vector.broadcast %119 : vector<8x1xi32> to vector<8x128xi32>
    %121 = arith.cmpi eq, %19, %120 : vector<8x128xi32>
    %cst_37 = arith.constant 1.000000e+00 : f32
    %cst_38 = arith.constant 0.000000e+00 : f32
    %122 = vector.broadcast %cst_37 : f32 to vector<8x128xf32>
    %123 = vector.broadcast %cst_38 : f32 to vector<8x128xf32>
    %124 = arith.select %121, %122, %123 : vector<8x128xi1>, vector<8x128xf32>
    %125 = arith.addf %118, %124 : vector<8x128xf32>
    %126 = vector.extract_strided_slice %5 {offsets = [0, 15], sizes = [8, 1], strides = [1, 1]} : vector<8x21xi32> to vector<8x1xi32>
    %127 = vector.broadcast %126 : vector<8x1xi32> to vector<8x128xi32>
    %128 = arith.cmpi eq, %19, %127 : vector<8x128xi32>
    %cst_39 = arith.constant 1.000000e+00 : f32
    %cst_40 = arith.constant 0.000000e+00 : f32
    %129 = vector.broadcast %cst_39 : f32 to vector<8x128xf32>
    %130 = vector.broadcast %cst_40 : f32 to vector<8x128xf32>
    %131 = arith.select %128, %129, %130 : vector<8x128xi1>, vector<8x128xf32>
    %132 = arith.addf %125, %131 : vector<8x128xf32>
    %133 = vector.extract_strided_slice %5 {offsets = [0, 16], sizes = [8, 1], strides = [1, 1]} : vector<8x21xi32> to vector<8x1xi32>
    %134 = vector.broadcast %133 : vector<8x1xi32> to vector<8x128xi32>
    %135 = arith.cmpi eq, %19, %134 : vector<8x128xi32>
    %cst_41 = arith.constant 1.000000e+00 : f32
    %cst_42 = arith.constant 0.000000e+00 : f32
    %136 = vector.broadcast %cst_41 : f32 to vector<8x128xf32>
    %137 = vector.broadcast %cst_42 : f32 to vector<8x128xf32>
    %138 = arith.select %135, %136, %137 : vector<8x128xi1>, vector<8x128xf32>
    %139 = arith.addf %132, %138 : vector<8x128xf32>
    %140 = vector.extract_strided_slice %5 {offsets = [0, 17], sizes = [8, 1], strides = [1, 1]} : vector<8x21xi32> to vector<8x1xi32>
    %141 = vector.broadcast %140 : vector<8x1xi32> to vector<8x128xi32>
    %142 = arith.cmpi eq, %19, %141 : vector<8x128xi32>
    %cst_43 = arith.constant 1.000000e+00 : f32
    %cst_44 = arith.constant 0.000000e+00 : f32
    %143 = vector.broadcast %cst_43 : f32 to vector<8x128xf32>
    %144 = vector.broadcast %cst_44 : f32 to vector<8x128xf32>
    %145 = arith.select %142, %143, %144 : vector<8x128xi1>, vector<8x128xf32>
    %146 = arith.addf %139, %145 : vector<8x128xf32>
    %147 = vector.extract_strided_slice %5 {offsets = [0, 18], sizes = [8, 1], strides = [1, 1]} : vector<8x21xi32> to vector<8x1xi32>
    %148 = vector.broadcast %147 : vector<8x1xi32> to vector<8x128xi32>
    %149 = arith.cmpi eq, %19, %148 : vector<8x128xi32>
    %cst_45 = arith.constant 1.000000e+00 : f32
    %cst_46 = arith.constant 0.000000e+00 : f32
    %150 = vector.broadcast %cst_45 : f32 to vector<8x128xf32>
    %151 = vector.broadcast %cst_46 : f32 to vector<8x128xf32>
    %152 = arith.select %149, %150, %151 : vector<8x128xi1>, vector<8x128xf32>
    %153 = arith.addf %146, %152 : vector<8x128xf32>
    %154 = vector.extract_strided_slice %5 {offsets = [0, 19], sizes = [8, 1], strides = [1, 1]} : vector<8x21xi32> to vector<8x1xi32>
    %155 = vector.broadcast %154 : vector<8x1xi32> to vector<8x128xi32>
    %156 = arith.cmpi eq, %19, %155 : vector<8x128xi32>
    %cst_47 = arith.constant 1.000000e+00 : f32
    %cst_48 = arith.constant 0.000000e+00 : f32
    %157 = vector.broadcast %cst_47 : f32 to vector<8x128xf32>
    %158 = vector.broadcast %cst_48 : f32 to vector<8x128xf32>
    %159 = arith.select %156, %157, %158 : vector<8x128xi1>, vector<8x128xf32>
    %160 = arith.addf %153, %159 : vector<8x128xf32>
    %161 = vector.extract_strided_slice %5 {offsets = [0, 20], sizes = [8, 1], strides = [1, 1]} : vector<8x21xi32> to vector<8x1xi32>
    %162 = vector.broadcast %161 : vector<8x1xi32> to vector<8x128xi32>
    %163 = arith.cmpi eq, %19, %162 : vector<8x128xi32>
    %cst_49 = arith.constant 1.000000e+00 : f32
    %cst_50 = arith.constant 0.000000e+00 : f32
    %164 = vector.broadcast %cst_49 : f32 to vector<8x128xf32>
    %165 = vector.broadcast %cst_50 : f32 to vector<8x128xf32>
    %166 = arith.select %163, %164, %165 : vector<8x128xi1>, vector<8x128xf32>
    %167 = arith.addf %160, %166 : vector<8x128xf32>
    %c120_i32 = arith.constant 120 : i32
    %168 = vector.broadcast %c120_i32 : i32 to vector<8x128xi32>
    %169 = arith.cmpi eq, %19, %168 : vector<8x128xi32>
    %170 = vector.extract_strided_slice %18 {offsets = [0, 0], sizes = [8, 1], strides = [1, 1]} : vector<8x8xf32> to vector<8x1xf32>
    %cst_51 = arith.constant 0.000000e+00 : f32
    %171 = vector.shape_cast %170 : vector<8x1xf32> to vector<8x1xf32>
    %172 = vector.broadcast %171 : vector<8x1xf32> to vector<8x128xf32>
    %173 = vector.broadcast %cst_51 : f32 to vector<8x128xf32>
    %174 = arith.select %169, %172, %173 : vector<8x128xi1>, vector<8x128xf32>
    %175 = arith.addf %167, %174 : vector<8x128xf32>
    %c121_i32 = arith.constant 121 : i32
    %176 = vector.broadcast %c121_i32 : i32 to vector<8x128xi32>
    %177 = arith.cmpi eq, %19, %176 : vector<8x128xi32>
    %178 = vector.extract_strided_slice %18 {offsets = [0, 1], sizes = [8, 1], strides = [1, 1]} : vector<8x8xf32> to vector<8x1xf32>
    %cst_52 = arith.constant 0.000000e+00 : f32
    %179 = vector.shape_cast %178 : vector<8x1xf32> to vector<8x1xf32>
    %180 = vector.broadcast %179 : vector<8x1xf32> to vector<8x128xf32>
    %181 = vector.broadcast %cst_52 : f32 to vector<8x128xf32>
    %182 = arith.select %177, %180, %181 : vector<8x128xi1>, vector<8x128xf32>
    %183 = arith.addf %175, %182 : vector<8x128xf32>
    %c122_i32 = arith.constant 122 : i32
    %184 = vector.broadcast %c122_i32 : i32 to vector<8x128xi32>
    %185 = arith.cmpi eq, %19, %184 : vector<8x128xi32>
    %186 = vector.extract_strided_slice %18 {offsets = [0, 2], sizes = [8, 1], strides = [1, 1]} : vector<8x8xf32> to vector<8x1xf32>
    %cst_53 = arith.constant 0.000000e+00 : f32
    %187 = vector.shape_cast %186 : vector<8x1xf32> to vector<8x1xf32>
    %188 = vector.broadcast %187 : vector<8x1xf32> to vector<8x128xf32>
    %189 = vector.broadcast %cst_53 : f32 to vector<8x128xf32>
    %190 = arith.select %185, %188, %189 : vector<8x128xi1>, vector<8x128xf32>
    %191 = arith.addf %183, %190 : vector<8x128xf32>
    %c123_i32 = arith.constant 123 : i32
    %192 = vector.broadcast %c123_i32 : i32 to vector<8x128xi32>
    %193 = arith.cmpi eq, %19, %192 : vector<8x128xi32>
    %194 = vector.extract_strided_slice %18 {offsets = [0, 3], sizes = [8, 1], strides = [1, 1]} : vector<8x8xf32> to vector<8x1xf32>
    %cst_54 = arith.constant 0.000000e+00 : f32
    %195 = vector.shape_cast %194 : vector<8x1xf32> to vector<8x1xf32>
    %196 = vector.broadcast %195 : vector<8x1xf32> to vector<8x128xf32>
    %197 = vector.broadcast %cst_54 : f32 to vector<8x128xf32>
    %198 = arith.select %193, %196, %197 : vector<8x128xi1>, vector<8x128xf32>
    %199 = arith.addf %191, %198 : vector<8x128xf32>
    %c124_i32 = arith.constant 124 : i32
    %200 = vector.broadcast %c124_i32 : i32 to vector<8x128xi32>
    %201 = arith.cmpi eq, %19, %200 : vector<8x128xi32>
    %202 = vector.extract_strided_slice %18 {offsets = [0, 4], sizes = [8, 1], strides = [1, 1]} : vector<8x8xf32> to vector<8x1xf32>
    %cst_55 = arith.constant 0.000000e+00 : f32
    %203 = vector.shape_cast %202 : vector<8x1xf32> to vector<8x1xf32>
    %204 = vector.broadcast %203 : vector<8x1xf32> to vector<8x128xf32>
    %205 = vector.broadcast %cst_55 : f32 to vector<8x128xf32>
    %206 = arith.select %201, %204, %205 : vector<8x128xi1>, vector<8x128xf32>
    %207 = arith.addf %199, %206 : vector<8x128xf32>
    %c125_i32 = arith.constant 125 : i32
    %208 = vector.broadcast %c125_i32 : i32 to vector<8x128xi32>
    %209 = arith.cmpi eq, %19, %208 : vector<8x128xi32>
    %210 = vector.extract_strided_slice %18 {offsets = [0, 5], sizes = [8, 1], strides = [1, 1]} : vector<8x8xf32> to vector<8x1xf32>
    %cst_56 = arith.constant 0.000000e+00 : f32
    %211 = vector.shape_cast %210 : vector<8x1xf32> to vector<8x1xf32>
    %212 = vector.broadcast %211 : vector<8x1xf32> to vector<8x128xf32>
    %213 = vector.broadcast %cst_56 : f32 to vector<8x128xf32>
    %214 = arith.select %209, %212, %213 : vector<8x128xi1>, vector<8x128xf32>
    %215 = arith.addf %207, %214 : vector<8x128xf32>
    %c126_i32 = arith.constant 126 : i32
    %216 = vector.broadcast %c126_i32 : i32 to vector<8x128xi32>
    %217 = arith.cmpi eq, %19, %216 : vector<8x128xi32>
    %218 = vector.extract_strided_slice %18 {offsets = [0, 6], sizes = [8, 1], strides = [1, 1]} : vector<8x8xf32> to vector<8x1xf32>
    %cst_57 = arith.constant 0.000000e+00 : f32
    %219 = vector.shape_cast %218 : vector<8x1xf32> to vector<8x1xf32>
    %220 = vector.broadcast %219 : vector<8x1xf32> to vector<8x128xf32>
    %221 = vector.broadcast %cst_57 : f32 to vector<8x128xf32>
    %222 = arith.select %217, %220, %221 : vector<8x128xi1>, vector<8x128xf32>
    %223 = arith.addf %215, %222 : vector<8x128xf32>
    %c127_i32 = arith.constant 127 : i32
    %224 = vector.broadcast %c127_i32 : i32 to vector<8x128xi32>
    %225 = arith.cmpi eq, %19, %224 : vector<8x128xi32>
    %226 = vector.extract_strided_slice %18 {offsets = [0, 7], sizes = [8, 1], strides = [1, 1]} : vector<8x8xf32> to vector<8x1xf32>
    %cst_58 = arith.constant 0.000000e+00 : f32
    %227 = vector.shape_cast %226 : vector<8x1xf32> to vector<8x1xf32>
    %228 = vector.broadcast %227 : vector<8x1xf32> to vector<8x128xf32>
    %229 = vector.broadcast %cst_58 : f32 to vector<8x128xf32>
    %230 = arith.select %225, %228, %229 : vector<8x128xi1>, vector<8x128xf32>
    %231 = arith.addf %223, %230 : vector<8x128xf32>
    %c0_59 = arith.constant 0 : index
    %c0_60 = arith.constant 0 : index
    %232 = vector.load %arg3[%c0_59, %c0_60] : memref<128x32xf32, #tpu.memory_space<vmem>>, vector<128x32xf32>
    %cst_61 = arith.constant dense<0.000000e+00> : vector<8x32xf32>
    %233 = tpu.matmul %231, %232, %cst_61 {dimension_numbers = #tpu.dot_dimension_numbers<[1], [0], [0], [1], [0, 0, 1, 1], [], []>} : vector<8x128xf32>, vector<128x32xf32>, vector<8x32xf32> -> vector<8x32xf32>
    %c0_62 = arith.constant 0 : index
    %c0_63 = arith.constant 0 : index
    %234 = vector.load %arg6[%c0_62, %c0_63] : memref<1x32xf32, #tpu.memory_space<vmem>>, vector<1x32xf32>
    %235 = vector.broadcast %234 : vector<1x32xf32> to vector<8x32xf32>
    %236 = arith.addf %233, %235 : vector<8x32xf32>
    %cst_64 = arith.constant 0.000000e+00 : f32
    %237 = vector.broadcast %cst_64 : f32 to vector<8x32xf32>
    %238 = arith.cmpf ogt, %236, %237 : vector<8x32xf32>
    %cst_65 = arith.constant 0.00999999977 : f32
    %239 = vector.broadcast %cst_65 : f32 to vector<8x32xf32>
    %240 = arith.mulf %239, %236 : vector<8x32xf32>
    %241 = arith.select %238, %236, %240 : vector<8x32xi1>, vector<8x32xf32>
    %c0_66 = arith.constant 0 : index
    %c0_67 = arith.constant 0 : index
    %242 = vector.load %arg7[%c0_66, %c0_67] : memref<8x32xf32, #tpu.memory_space<vmem>>, vector<8x32xf32>
    tpu.vector_store %arg7[%c0_66, %c0_67], %241 {strides = array<i32>} : memref<8x32xf32, #tpu.memory_space<vmem>>, vector<8x32xf32>,
    return
  }
  func.func @transform_0(%arg0: i32) -> (i32, i32) {
    %c0_i32 = arith.constant 0 : i32
    %c0_i32_0 = arith.constant 0 : i32
    return %arg0, %c0_i32 : i32, i32
  }
  func.func @transform_1(%arg0: i32) -> (i32, i32) {
    %c0_i32 = arith.constant 0 : i32
    %c0_i32_0 = arith.constant 0 : i32
    %c0_i32_1 = arith.constant 0 : i32
    return %c0_i32, %c0_i32_0 : i32, i32
  }
  func.func @transform_2(%arg0: i32) -> (i32, i32) {
    %c0_i32 = arith.constant 0 : i32
    %c0_i32_0 = arith.constant 0 : i32
    %c0_i32_1 = arith.constant 0 : i32
    return %c0_i32, %c0_i32_0 : i32, i32
  }
  func.func @transform_3(%arg0: i32) -> (i32, i32) {
    %c0_i32 = arith.constant 0 : i32
    %c0_i32_0 = arith.constant 0 : i32
    %c0_i32_1 = arith.constant 0 : i32
    return %c0_i32, %c0_i32_0 : i32, i32
  }
  func.func @transform_4(%arg0: i32) -> (i32, i32) {
    %c0_i32 = arith.constant 0 : i32
    %c0_i32_0 = arith.constant 0 : i32
    %c0_i32_1 = arith.constant 0 : i32
    return %c0_i32, %c0_i32_0 : i32, i32
  }
  func.func @transform_5(%arg0: i32) -> (i32, i32) {
    %c0_i32 = arith.constant 0 : i32
    %c0_i32_0 = arith.constant 0 : i32
    %c0_i32_1 = arith.constant 0 : i32
    return %c0_i32, %c0_i32_0 : i32, i32
  }
  func.func @transform_6(%arg0: i32) -> (i32, i32) {
    %c0_i32 = arith.constant 0 : i32
    %c0_i32_0 = arith.constant 0 : i32
    return %arg0, %c0_i32 : i32, i32
  }
}

</mosaic_0001>

<llo_original>
// kernel: tpu_custom_call.1
$region0: #{tpu_custom_call.1}
  #allocation0 [shape = 'u32[]', space=smem, size = 0x4, offset = 0x4, fixed_abs, tag = 'smem constant byte address 0x4 - core index']
  #allocation1 [shape = 'u32[144,128]{1,0:T(1,128)}', space=vmem, size = 0x12000, scoped, tag = 'internal scratch']
  %s0 = inlined_call_operand.vmem [shape: f32[16,22], index: 0, kind: input, shape index: {}]
  %s1 = inlined_call_operand.vmem [shape: s32[1,21], index: 1, kind: input, shape index: {}]
  %s2 = inlined_call_operand.vmem [shape: f32[128,32], index: 2, kind: input, shape index: {}]
  %s3 = inlined_call_operand.vmem [shape: f32[1,8], index: 3, kind: input, shape index: {}]
  %s4 = inlined_call_operand.vmem [shape: f32[1,8], index: 4, kind: input, shape index: {}]
  %s5 = inlined_call_operand.vmem [shape: f32[1,32], index: 5, kind: input, shape index: {}]
  %s6 = inlined_call_operand.hbm [shape: f32[16,32], index: 6, kind: output, shape index: {}]
  %s7 = sld [smem:[#allocation0]]
  $region57: #{tpu_custom_call.1} parent=0
    _
  %s9 = ssub.s32 1, %s7
  %s10 = scalar_select 0, %s9, %s7
  $region1: #{tpu_custom_call.1} parent=0
    #allocation2 [shape = 'u8[8192]{0}', space=vmem, size = 0x2000, scoped, tag = 'output window, operand 0']
    #allocation3 [shape = 's32[2]{0}', space=sflag, size = 0x8, scoped, tag = 'scoped memory for tpu_custom_call.1']
    %11 = vsyncpa [#allocation3], 0
    %s12 = scalar_lea.sflag [#allocation3], 1
    %13 = vsyncpa %s12, 0
    loop: start=0, step=1, limit=4
    $region2: #{tpu_custom_call.1} parent=1 // loop_pre_header
      _
    $region3: #{tpu_custom_call.1} parent=1 // loop_header
      %s15 = sphi 0, %s19
      %p16 = scmp.ge.s32.totalorder %s15, 4
      %s25 = sphi 0, %s27
      %s28 = sphi 0, %s25
      %s29 = sphi 0, %s28
      %s45 = sphi 0, %s29
      %s49 = sphi 0, %s49
      %s51 = sphi 0, %s49
      %s52 = sphi 0, %s51
      %s66 = sphi 0, %s52
      %s70 = sphi 0, %s70
      %s72 = sphi 0, %s70
      %s73 = sphi 0, %s72
      %s87 = sphi 0, %s73
      %s91 = sphi 0, %s91
      %s93 = sphi 0, %s91
      %s94 = sphi 0, %s93
      %s108 = sphi 0, %s94
      %s112 = sphi 0, %s112
      %s114 = sphi 0, %s112
      %s115 = sphi 0, %s114
      %s129 = sphi 0, %s115
      %s133 = sphi 0, %s133
      %s135 = sphi 0, %s133
      %s136 = sphi 0, %s135
      %s150 = sphi 0, %s136
      %s156 = sphi 0, %s158
      %s159 = sphi 0, %s156
      %s160 = sphi 0, %s159
      %s176 = sphi 0, %s160
    $region4: #{tpu_custom_call.1} parent=1 // loop_header_branch
      %18 = sbr.rel (%p16) target = $region8
    $region5: #{tpu_custom_call.1} parent=1 // loop_body
      %s20 = ssub.s32 %s15, 1
      %s21 = ssub.s32 %s15, 2
      %s22 = sadd.s32 %s15, 1
      %s23 = ssub.s32 %s15, %s22
      %p24 = scmp.eq.s32.totalorder %s23, 0
      %s26 = sadd.s32 %s25, 1
      %s27 = scalar_select %p24, %s25, %s26
      %p30 = pneg %p24
      %p31 = scmp.eq.s32.totalorder %s15, 1
      %p32 = por %p30, %p31
      %p33 = scmp.ne.s32.totalorder %s25, %s28
      %p34 = scmp.eq.s32.totalorder %s15, 0
      %p35 = por %p33, %p34
      %p36 = scmp.ne.s32.totalorder %s25, %s28
      %p37 = scmp.eq.s32.totalorder %s20, 1
      %p38 = por %p36, %p37
      %p39 = scmp.ne.s32.totalorder %s28, %s29
      %p40 = scmp.eq.s32.totalorder %s20, 0
      %p41 = por %p39, %p40
      %p42 = scmp.ne.s32.totalorder %s28, %s29
      %p43 = scmp.eq.s32.totalorder %s21, 1
      %p44 = por %p42, %p43
      %p46 = scmp.ne.s32.totalorder %s29, %s45
      %p47 = scmp.eq.s32.totalorder %s21, 0
      %p48 = por %p46, %p47
      %s50 = sadd.s32 %s49, 1
      %p53 = scmp.eq.s32.totalorder %s15, 1
      %p54 = scmp.ne.s32.totalorder %s49, %s51
      %p55 = scmp.eq.s32.totalorder %s15, 0
      %p56 = por %p54, %p55
      %p57 = scmp.ne.s32.totalorder %s49, %s51
      %p58 = scmp.eq.s32.totalorder %s20, 1
      %p59 = por %p57, %p58
      %p60 = scmp.ne.s32.totalorder %s51, %s52
      %p61 = scmp.eq.s32.totalorder %s20, 0
      %p62 = por %p60, %p61
      %p63 = scmp.ne.s32.totalorder %s51, %s52
      %p64 = scmp.eq.s32.totalorder %s21, 1
      %p65 = por %p63, %p64
      %p67 = scmp.ne.s32.totalorder %s52, %s66
      %p68 = scmp.eq.s32.totalorder %s21, 0
      %p69 = por %p67, %p68
      %s71 = sadd.s32 %s70, 1
      %p74 = scmp.eq.s32.totalorder %s15, 1
      %p75 = scmp.ne.s32.totalorder %s70, %s72
      %p76 = scmp.eq.s32.totalorder %s15, 0
      %p77 = por %p75, %p76
      %p78 = scmp.ne.s32.totalorder %s70, %s72
      %p79 = scmp.eq.s32.totalorder %s20, 1
      %p80 = por %p78, %p79
      %p81 = scmp.ne.s32.totalorder %s72, %s73
      %p82 = scmp.eq.s32.totalorder %s20, 0
      %p83 = por %p81, %p82
      %p84 = scmp.ne.s32.totalorder %s72, %s73
      %p85 = scmp.eq.s32.totalorder %s21, 1
      %p86 = por %p84, %p85
      %p88 = scmp.ne.s32.totalorder %s73, %s87
      %p89 = scmp.eq.s32.totalorder %s21, 0
      %p90 = por %p88, %p89
      %s92 = sadd.s32 %s91, 1
      %p95 = scmp.eq.s32.totalorder %s15, 1
      %p96 = scmp.ne.s32.totalorder %s91, %s93
      %p97 = scmp.eq.s32.totalorder %s15, 0
      %p98 = por %p96, %p97
      %p99 = scmp.ne.s32.totalorder %s91, %s93
      %p100 = scmp.eq.s32.totalorder %s20, 1
      %p101 = por %p99, %p100
      %p102 = scmp.ne.s32.totalorder %s93, %s94
      %p103 = scmp.eq.s32.totalorder %s20, 0
      %p104 = por %p102, %p103
      %p105 = scmp.ne.s32.totalorder %s93, %s94
      %p106 = scmp.eq.s32.totalorder %s21, 1
      %p107 = por %p105, %p106
      %p109 = scmp.ne.s32.totalorder %s94, %s108
      %p110 = scmp.eq.s32.totalorder %s21, 0
      %p111 = por %p109, %p110
      %s113 = sadd.s32 %s112, 1
      %p116 = scmp.eq.s32.totalorder %s15, 1
      %p117 = scmp.ne.s32.totalorder %s112, %s114
      %p118 = scmp.eq.s32.totalorder %s15, 0
      %p119 = por %p117, %p118
      %p120 = scmp.ne.s32.totalorder %s112, %s114
      %p121 = scmp.eq.s32.totalorder %s20, 1
      %p122 = por %p120, %p121
      %p123 = scmp.ne.s32.totalorder %s114, %s115
      %p124 = scmp.eq.s32.totalorder %s20, 0
      %p125 = por %p123, %p124
      %p126 = scmp.ne.s32.totalorder %s114, %s115
      %p127 = scmp.eq.s32.totalorder %s21, 1
      %p128 = por %p126, %p127
      %p130 = scmp.ne.s32.totalorder %s115, %s129
      %p131 = scmp.eq.s32.totalorder %s21, 0
      %p132 = por %p130, %p131
      %s134 = sadd.s32 %s133, 1
      %p137 = scmp.eq.s32.totalorder %s15, 1
      %p138 = scmp.ne.s32.totalorder %s133, %s135
      %p139 = scmp.eq.s32.totalorder %s15, 0
      %p140 = por %p138, %p139
      %p141 = scmp.ne.s32.totalorder %s133, %s135
      %p142 = scmp.eq.s32.totalorder %s20, 1
      %p143 = por %p141, %p142
      %p144 = scmp.ne.s32.totalorder %s135, %s136
      %p145 = scmp.eq.s32.totalorder %s20, 0
      %p146 = por %p144, %p145
      %p147 = scmp.ne.s32.totalorder %s135, %s136
      %p148 = scmp.eq.s32.totalorder %s21, 1
      %p149 = por %p147, %p148
      %p151 = scmp.ne.s32.totalorder %s136, %s150
      %p152 = scmp.eq.s32.totalorder %s21, 0
      %p153 = por %p151, %p152
      %s154 = ssub.s32 %s15, %s22
      %p155 = scmp.eq.s32.totalorder %s154, 0
      %s157 = sadd.s32 %s156, 1
      %s158 = scalar_select %p155, %s156, %s157
      %p161 = pneg %p155
      %p162 = scmp.eq.s32.totalorder %s15, 1
      %p163 = por %p161, %p162
      %p164 = scmp.ne.s32.totalorder %s156, %s159
      %p165 = scmp.eq.s32.totalorder %s15, 0
      %p166 = por %p164, %p165
      %p167 = scmp.ne.s32.totalorder %s156, %s159
      %p168 = scmp.eq.s32.totalorder %s20, 1
      %p169 = por %p167, %p168
      %p170 = scmp.ne.s32.totalorder %s159, %s160
      %p171 = scmp.eq.s32.totalorder %s20, 0
      %p172 = por %p170, %p171
      %p173 = scmp.ne.s32.totalorder %s159, %s160
      %p174 = scmp.eq.s32.totalorder %s21, 1
      %p175 = por %p173, %p174
      %p177 = scmp.ne.s32.totalorder %s160, %s176
      %p178 = scmp.eq.s32.totalorder %s21, 0
      %p179 = por %p177, %p178
      %p180 = scmp.le.s32.totalorder 1, %s15
      %p181 = scmp.lt.s32.totalorder %s15, 3
      %p182 = pnand %p180, %p181
      %p183 = pneg %p182
      // Predicated region
      $region9: #{tpu_custom_call.1} parent=5 // pred_check
        _
      $region10: #{tpu_custom_call.1} parent=5 // pred_check_branch
        %185 = sbr.rel (%p182) target = $region12
      $region11: #{tpu_custom_call.1} parent=5 // pred_region
        %s186 = ssub.s32 %s15, 1
        // Predicated region
        $region13: #{tpu_custom_call.1} parent=11 // pred_check
          %p187 = pneg %p62
        $region14: #{tpu_custom_call.1} parent=11 // pred_check_branch
          %189 = sbr.rel (%p187) target = $region16
        $region15: #{tpu_custom_call.1} parent=11 // pred_region
          _
        $region16: #{tpu_custom_call.1} parent=11 // pred_fallthru
          _
        // Predicated region
        $region17: #{tpu_custom_call.1} parent=11 // pred_check
          %p190 = pneg %p83
        $region18: #{tpu_custom_call.1} parent=11 // pred_check_branch
          %192 = sbr.rel (%p190) target = $region20
        $region19: #{tpu_custom_call.1} parent=11 // pred_region
          _
        $region20: #{tpu_custom_call.1} parent=11 // pred_fallthru
          _
        // Predicated region
        $region21: #{tpu_custom_call.1} parent=11 // pred_check
          %p193 = pneg %p104
        $region22: #{tpu_custom_call.1} parent=11 // pred_check_branch
          %195 = sbr.rel (%p193) target = $region24
        $region23: #{tpu_custom_call.1} parent=11 // pred_region
          _
        $region24: #{tpu_custom_call.1} parent=11 // pred_fallthru
          _
        // Predicated region
        $region25: #{tpu_custom_call.1} parent=11 // pred_check
          %p196 = pneg %p125
        $region26: #{tpu_custom_call.1} parent=11 // pred_check_branch
          %198 = sbr.rel (%p196) target = $region28
        $region27: #{tpu_custom_call.1} parent=11 // pred_region
          _
        $region28: #{tpu_custom_call.1} parent=11 // pred_fallthru
          _
        // Predicated region
        $region29: #{tpu_custom_call.1} parent=11 // pred_check
          %p199 = pneg %p146
        $region30: #{tpu_custom_call.1} parent=11 // pred_check_branch
          %201 = sbr.rel (%p199) target = $region32
        $region31: #{tpu_custom_call.1} parent=11 // pred_region
          _
        $region32: #{tpu_custom_call.1} parent=11 // pred_fallthru
          _
      $region12: #{tpu_custom_call.1} parent=5 // pred_fallthru
        _
      %p202 = scmp.lt.s32.totalorder %s15, 2
      // Predicated region
      $region33: #{tpu_custom_call.1} parent=5 // pred_check
        %p203 = pneg %p202
      $region34: #{tpu_custom_call.1} parent=5 // pred_check_branch
        %205 = sbr.rel (%p203) target = $region36
      $region35: #{tpu_custom_call.1} parent=5 // pred_region
        // Predicated region
        $region37: #{tpu_custom_call.1} parent=35 // pred_check
          %p206 = pneg %p35
        $region38: #{tpu_custom_call.1} parent=35 // pred_check_branch
          %208 = sbr.rel (%p206) target = $region40
        $region39: #{tpu_custom_call.1} parent=35 // pred_region
          %p209 = scmp.lt.s32.totalorder %s15, 1
          %s210 = scalar_select %p209, %s15, 1
          %s211 = smul.addr %s210, 8
          %s212 = scalar_lea.vmem %s0, %s211
        $region40: #{tpu_custom_call.1} parent=35 // pred_fallthru
          _
      $region36: #{tpu_custom_call.1} parent=5 // pred_fallthru
        _
      %p213 = scmp.le.s32.totalorder 1, %s15
      %p214 = scmp.lt.s32.totalorder %s15, 3
      %p215 = pnand %p213, %p214
      %p216 = pneg %p215
      // Predicated region
      $region41: #{tpu_custom_call.1} parent=5 // pred_check
        _
      $region42: #{tpu_custom_call.1} parent=5 // pred_check_branch
        %218 = sbr.rel (%p215) target = $region44
      $region43: #{tpu_custom_call.1} parent=5 // pred_region
        %s219 = ssub.s32 %s15, 1
        %p220 = scmp.lt.s32.totalorder %s20, 1
        %s221 = scalar_select %p220, %s20, 1
        %s222 = smul.addr %s221, 8
        %s223 = scalar_lea.vmem %s0, %s222
        %p224 = pneg %p41
        %p225 = pneg %p38
        %p226 = pneg %p62
        %p227 = pneg %p59
        %p228 = pneg %p83
        %p229 = pneg %p80
        %p230 = pneg %p104
        %p231 = pneg %p101
        %p232 = pneg %p125
        %p233 = pneg %p122
        %p234 = pneg %p146
        %p235 = pneg %p143
        %p236 = pneg %p172
        %p237 = pneg %p169
        %s238 = sand.u32 %s159, 1
        %s239 = scalar_lea.sflag [#allocation3], %s238
        %s240 = sand.u32 %s159, 1
        %s241 = smul.addr %s240, 8
        %s242 = scalar_lea.vmem [#allocation2], %s241
        %p243 = scmp.lt.s32.totalorder %s20, 1
        %s244 = scalar_select %p243, %s20, 1
        %s245 = smul.addr %s244, 8
        %s246 = scalar_lea.vmem %s0, %s245
        %v247 = vld [vmem:[%s246] sm:$0xff]
        %v248 = vcvt.f32.s32.to.zero.pseudo %v247
        %v249 = vld [vmem:[%s1] sm:$0x1]
        %v250 = vlaneseq
        %v251 = vshrl.u32 %v250, 7
        %v252 = vsub.s32 0, %v251
        %v253 = vrot.slane %v249, %v252
        %v254 = vadd.s32 %v248, %v253
        %v255 = vld [vmem:[%s3] sm:$0x1]
        %257 = vset.pattern.permute.xlu0 21
        %258 = vperm.xlu0 %257, %v247
        %v259 = vpop.permute.xlu0 %258
        %v262 = vlaneseq
        %v263 = vshrl.u32 %v262, 7
        %v264 = vsub.s32 0, %v263
        %v265 = vrot.slane %v255, %v264
        %v267 = vmul.f32 %v259, %v265
        %v268 = vld [vmem:[%s4] sm:$0x1]
        %v270 = vlaneseq
        %v271 = vshrl.u32 %v270, 7
        %v272 = vsub.s32 0, %v271
        %v273 = vrot.slane %v268, %v272
        %v275 = vadd.f32 %v267, %v273
        %vm276 = vcmp.gt.f32.partialorder %v275, 0.0
        %v277 = vmul.f32 %v275, 0.01
        %v278 = vsel %vm276, %v275, %v277
        %v279 = vlaneseq
        %v280 = vand.u32 %v279, 127
        %281 = vset.pattern.permute.xlu0 0
        %282 = vperm.xlu0 %281, %v254
        %v283 = vpop.permute.xlu0 %282
        %vm284 = vcmp.eq.s32.totalorder %v280, %v283
        %v285 = vsel %vm284, 1.0, 0.0
        %v286 = vadd.f32 %v285, 0.0
        %287 = vset.pattern.permute.xlu0 1
        %288 = vperm.xlu0 %287, %v254
        %v289 = vpop.permute.xlu0 %288
        %vm290 = vcmp.eq.s32.totalorder %v280, %v289
        %v291 = vsel %vm290, 1.0, 0.0
        %v292 = vadd.f32 %v286, %v291
        %293 = vset.pattern.permute.xlu0 2
        %294 = vperm.xlu0 %293, %v254
        %v295 = vpop.permute.xlu0 %294
        %vm296 = vcmp.eq.s32.totalorder %v280, %v295
        %v297 = vsel %vm296, 1.0, 0.0
        %v298 = vadd.f32 %v292, %v297
        %299 = vset.pattern.permute.xlu0 3
        %300 = vperm.xlu0 %299, %v254
        %v301 = vpop.permute.xlu0 %300
        %vm302 = vcmp.eq.s32.totalorder %v280, %v301
        %v303 = vsel %vm302, 1.0, 0.0
        %v304 = vadd.f32 %v298, %v303
        %305 = vset.pattern.permute.xlu0 4
        %306 = vperm.xlu0 %305, %v254
        %v307 = vpop.permute.xlu0 %306
        %vm308 = vcmp.eq.s32.totalorder %v280, %v307
        %v309 = vsel %vm308, 1.0, 0.0
        %v310 = vadd.f32 %v304, %v309
        %311 = vset.pattern.permute.xlu0 5
        %312 = vperm.xlu0 %311, %v254
        %v313 = vpop.permute.xlu0 %312
        %vm314 = vcmp.eq.s32.totalorder %v280, %v313
        %v315 = vsel %vm314, 1.0, 0.0
        %v316 = vadd.f32 %v310, %v315
        %317 = vset.pattern.permute.xlu0 6
        %318 = vperm.xlu0 %317, %v254
        %v319 = vpop.permute.xlu0 %318
        %vm320 = vcmp.eq.s32.totalorder %v280, %v319
        %v321 = vsel %vm320, 1.0, 0.0
        %v322 = vadd.f32 %v316, %v321
        %323 = vset.pattern.permute.xlu0 7
        %324 = vperm.xlu0 %323, %v254
        %v325 = vpop.permute.xlu0 %324
        %vm326 = vcmp.eq.s32.totalorder %v280, %v325
        %v327 = vsel %vm326, 1.0, 0.0
        %v328 = vadd.f32 %v322, %v327
        %329 = vset.pattern.permute.xlu0 8
        %330 = vperm.xlu0 %329, %v254
        %v331 = vpop.permute.xlu0 %330
        %vm332 = vcmp.eq.s32.totalorder %v280, %v331
        %v333 = vsel %vm332, 1.0, 0.0
        %v334 = vadd.f32 %v328, %v333
        %335 = vset.pattern.permute.xlu0 9
        %336 = vperm.xlu0 %335, %v254
        %v337 = vpop.permute.xlu0 %336
        %vm338 = vcmp.eq.s32.totalorder %v280, %v337
        %v339 = vsel %vm338, 1.0, 0.0
        %v340 = vadd.f32 %v334, %v339
        %341 = vset.pattern.permute.xlu0 10
        %342 = vperm.xlu0 %341, %v254
        %v343 = vpop.permute.xlu0 %342
        %vm344 = vcmp.eq.s32.totalorder %v280, %v343
        %v345 = vsel %vm344, 1.0, 0.0
        %v346 = vadd.f32 %v340, %v345
        %347 = vset.pattern.permute.xlu0 11
        %348 = vperm.xlu0 %347, %v254
        %v349 = vpop.permute.xlu0 %348
        %vm350 = vcmp.eq.s32.totalorder %v280, %v349
        %v351 = vsel %vm350, 1.0, 0.0
        %v352 = vadd.f32 %v346, %v351
        %353 = vset.pattern.permute.xlu0 12
        %354 = vperm.xlu0 %353, %v254
        %v355 = vpop.permute.xlu0 %354
        %vm356 = vcmp.eq.s32.totalorder %v280, %v355
        %v357 = vsel %vm356, 1.0, 0.0
        %v358 = vadd.f32 %v352, %v357
        %359 = vset.pattern.permute.xlu0 13
        %360 = vperm.xlu0 %359, %v254
        %v361 = vpop.permute.xlu0 %360
        %vm362 = vcmp.eq.s32.totalorder %v280, %v361
        %v363 = vsel %vm362, 1.0, 0.0
        %v364 = vadd.f32 %v358, %v363
        %365 = vset.pattern.permute.xlu0 14
        %366 = vperm.xlu0 %365, %v254
        %v367 = vpop.permute.xlu0 %366
        %vm368 = vcmp.eq.s32.totalorder %v280, %v367
        %v369 = vsel %vm368, 1.0, 0.0
        %v370 = vadd.f32 %v364, %v369
        %371 = vset.pattern.permute.xlu0 15
        %372 = vperm.xlu0 %371, %v254
        %v373 = vpop.permute.xlu0 %372
        %vm374 = vcmp.eq.s32.totalorder %v280, %v373
        %v375 = vsel %vm374, 1.0, 0.0
        %v376 = vadd.f32 %v370, %v375
        %377 = vset.pattern.permute.xlu0 16
        %378 = vperm.xlu0 %377, %v254
        %v379 = vpop.permute.xlu0 %378
        %vm380 = vcmp.eq.s32.totalorder %v280, %v379
        %v381 = vsel %vm380, 1.0, 0.0
        %v382 = vadd.f32 %v376, %v381
        %383 = vset.pattern.permute.xlu0 17
        %384 = vperm.xlu0 %383, %v254
        %v385 = vpop.permute.xlu0 %384
        %vm386 = vcmp.eq.s32.totalorder %v280, %v385
        %v387 = vsel %vm386, 1.0, 0.0
        %v388 = vadd.f32 %v382, %v387
        %389 = vset.pattern.permute.xlu0 18
        %390 = vperm.xlu0 %389, %v254
        %v391 = vpop.permute.xlu0 %390
        %vm392 = vcmp.eq.s32.totalorder %v280, %v391
        %v393 = vsel %vm392, 1.0, 0.0
        %v394 = vadd.f32 %v388, %v393
        %395 = vset.pattern.permute.xlu0 19
        %396 = vperm.xlu0 %395, %v254
        %v397 = vpop.permute.xlu0 %396
        %vm398 = vcmp.eq.s32.totalorder %v280, %v397
        %v399 = vsel %vm398, 1.0, 0.0
        %v400 = vadd.f32 %v394, %v399
        %401 = vset.pattern.permute.xlu0 20
        %402 = vperm.xlu0 %401, %v254
        %v403 = vpop.permute.xlu0 %402
        %vm404 = vcmp.eq.s32.totalorder %v280, %v403
        %v405 = vsel %vm404, 1.0, 0.0
        %v406 = vadd.f32 %v400, %v405
        %vm407 = vcmp.eq.s32.totalorder %v280, 120
        %409 = vset.pattern.permute.xlu0 0
        %410 = vperm.xlu0 %409, %v278
        %v411 = vpop.permute.xlu0 %410
        %v413 = vsel %vm407, %v411, 0.0
        %v414 = vadd.f32 %v406, %v413
        %vm415 = vcmp.eq.s32.totalorder %v280, 121
        %416 = vset.pattern.permute.xlu0 1
        %417 = vperm.xlu0 %416, %v278
        %v418 = vpop.permute.xlu0 %417
        %v420 = vsel %vm415, %v418, 0.0
        %v421 = vadd.f32 %v414, %v420
        %vm422 = vcmp.eq.s32.totalorder %v280, 122
        %423 = vset.pattern.permute.xlu0 2
        %424 = vperm.xlu0 %423, %v278
        %v425 = vpop.permute.xlu0 %424
        %v427 = vsel %vm422, %v425, 0.0
        %v428 = vadd.f32 %v421, %v427
        %vm429 = vcmp.eq.s32.totalorder %v280, 123
        %430 = vset.pattern.permute.xlu0 3
        %431 = vperm.xlu0 %430, %v278
        %v432 = vpop.permute.xlu0 %431
        %v434 = vsel %vm429, %v432, 0.0
        %v435 = vadd.f32 %v428, %v434
        %vm436 = vcmp.eq.s32.totalorder %v280, 124
        %437 = vset.pattern.permute.xlu0 4
        %438 = vperm.xlu0 %437, %v278
        %v439 = vpop.permute.xlu0 %438
        %v441 = vsel %vm436, %v439, 0.0
        %v442 = vadd.f32 %v435, %v441
        %vm443 = vcmp.eq.s32.totalorder %v280, 125
        %444 = vset.pattern.permute.xlu0 5
        %445 = vperm.xlu0 %444, %v278
        %v446 = vpop.permute.xlu0 %445
        %v448 = vsel %vm443, %v446, 0.0
        %v449 = vadd.f32 %v442, %v448
        %vm450 = vcmp.eq.s32.totalorder %v280, 126
        %451 = vset.pattern.permute.xlu0 6
        %452 = vperm.xlu0 %451, %v278
        %v453 = vpop.permute.xlu0 %452
        %v455 = vsel %vm450, %v453, 0.0
        %v456 = vadd.f32 %v449, %v455
        %vm457 = vcmp.eq.s32.totalorder %v280, 127
        %458 = vset.pattern.permute.xlu0 7
        %459 = vperm.xlu0 %458, %v278
        %v460 = vpop.permute.xlu0 %459
        %v462 = vsel %vm457, %v460, 0.0
        %v463 = vadd.f32 %v456, %v462
        %v464 = vld [vmem:[%s2] sm:$0xff]
        %v465 = vld [vmem:[%s2 + $0x8] sm:$0xff]
        %v466 = vld [vmem:[%s2 + $0x10] sm:$0xff]
        %v467 = vld [vmem:[%s2 + $0x18] sm:$0xff]
        %v468 = vld [vmem:[%s2 + $0x20] sm:$0xff]
        %v469 = vld [vmem:[%s2 + $0x28] sm:$0xff]
        %v470 = vld [vmem:[%s2 + $0x30] sm:$0xff]
        %v471 = vld [vmem:[%s2 + $0x38] sm:$0xff]
        %v472 = vld [vmem:[%s2 + $0x40] sm:$0xff]
        %v473 = vld [vmem:[%s2 + $0x48] sm:$0xff]
        %v474 = vld [vmem:[%s2 + $0x50] sm:$0xff]
        %v475 = vld [vmem:[%s2 + $0x58] sm:$0xff]
        %v476 = vld [vmem:[%s2 + $0x60] sm:$0xff]
        %v477 = vld [vmem:[%s2 + $0x68] sm:$0xff]
        %v478 = vld [vmem:[%s2 + $0x70] sm:$0xff]
        %v479 = vld [vmem:[%s2 + $0x78] sm:$0xff]
        %v480 = vld [vmem:[%s5] sm:$0x1]
        %v482 = vlaneseq
        %v483 = vshrl.u32 %v482, 7
        %v484 = vsub.s32 0, %v483
        %v485 = vrot.slane %v480, %v484
        %487 = vmatprep.subr.mxu0 0.0
        %488 = vmatpush1.msra.mxu0 %v464
        %489 = vmatprep.subr.mxu0 0.0
        %490 = vmatpush1.msra.mxu0 %v465
        %491 = vmatprep.subr.mxu0 0.0
        %492 = vmatpush1.msra.mxu0 %v466
        %493 = vmatprep.subr.mxu0 0.0
        %494 = vmatpush1.msra.mxu0 %v467
        %495 = vmatprep.subr.mxu0 0.0
        %496 = vmatpush1.msra.mxu0 %v468
        %497 = vmatprep.subr.mxu0 0.0
        %498 = vmatpush1.msra.mxu0 %v469
        %499 = vmatprep.subr.mxu0 0.0
        %500 = vmatpush1.msra.mxu0 %v470
        %501 = vmatprep.subr.mxu0 0.0
        %502 = vmatpush1.msra.mxu0 %v471
        %503 = vmatprep.subr.mxu0 0.0
        %504 = vmatpush1.msra.mxu0 %v472
        %505 = vmatprep.subr.mxu0 0.0
        %506 = vmatpush1.msra.mxu0 %v473
        %507 = vmatprep.subr.mxu0 0.0
        %508 = vmatpush1.msra.mxu0 %v474
        %509 = vmatprep.subr.mxu0 0.0
        %510 = vmatpush1.msra.mxu0 %v475
        %511 = vmatprep.subr.mxu0 0.0
        %512 = vmatpush1.msra.mxu0 %v476
        %513 = vmatprep.subr.mxu0 0.0
        %514 = vmatpush1.msra.mxu0 %v477
        %515 = vmatprep.subr.mxu0 0.0
        %516 = vmatpush1.msra.mxu0 %v478
        %517 = vmatprep.subr.mxu0 0.0
        %518 = vmatpush1.msra.mxu0 %v479
        %519 = vmatprep.subr.mxu0 0.0
        %520 = vmatpush1.msra.mxu0 0.0
        %521 = vmatprep.subr.mxu0 0.0
        %522 = vmatpush1.msra.mxu0 0.0
        %523 = vmatprep.subr.mxu0 0.0
        %524 = vmatpush1.msra.mxu0 0.0
        %525 = vmatprep.subr.mxu0 0.0
        %526 = vmatpush1.msra.mxu0 0.0
        %527 = vmatprep.subr.mxu0 0.0
        %528 = vmatpush1.msra.mxu0 0.0
        %529 = vmatprep.subr.mxu0 0.0
        %530 = vmatpush1.msra.mxu0 0.0
        %531 = vmatprep.subr.mxu0 0.0
        %532 = vmatpush1.msra.mxu0 0.0
        %533 = vmatprep.subr.mxu0 0.0
        %534 = vmatpush1.msra.mxu0 0.0
        %535 = vmatprep.subr.mxu0 0.0
        %536 = vmatpush1.msra.mxu0 0.0
        %537 = vmatprep.subr.mxu0 0.0
        %538 = vmatpush1.msra.mxu0 0.0
        %539 = vmatprep.subr.mxu0 0.0
        %540 = vmatpush1.msra.mxu0 0.0
        %541 = vmatprep.subr.mxu0 0.0
        %542 = vmatpush1.msra.mxu0 0.0
        %543 = vmatprep.subr.mxu0 0.0
        %544 = vmatpush1.msra.mxu0 0.0
        %545 = vmatprep.subr.mxu0 0.0
        %546 = vmatpush1.msra.mxu0 0.0
        %547 = vmatprep.subr.mxu0 0.0
        %548 = vmatpush1.msra.mxu0 0.0
        %549 = vmatprep.subr.mxu0 0.0
        %550 = vmatpush1.msra.mxu0 0.0
        %551 = vmatprep.mubr.f32.mxu0 0.0
        %552 = vmatmul.mubr.f32.gmra.mrb[0].mxu0 %v463
        %v553 = vpop.f32.mrb[0].mxu0
        %v554 = vadd.f32 %v485, %v553
        %v555 = vpop.f32.mrb[0].mxu0
        %556 = vdwg.mxu0
        %vm557 = vcmp.gt.f32.partialorder %v554, 0.0
        %v558 = vmul.f32 %v554, 0.01
        %v559 = vsel %vm557, %v554, %v558
        %vm560 = vcmask 261120
        %561 = vst.msk [vmem:[%s242] sm:$0xff] %vm560, %v559
        %s562 = sand.u32 %s159, 1
        %s563 = scalar_lea.sflag [#allocation3], %s562
        %s564 = sand.u32 %s159, 1
        %s565 = smul.addr %s564, 8
        %s566 = scalar_lea.vmem [#allocation2], %s565
        // Predicated region
        $region45: #{tpu_custom_call.1} parent=43 // pred_check
          %p567 = pneg %p169
        $region46: #{tpu_custom_call.1} parent=43 // pred_check_branch
          %569 = sbr.rel (%p567) target = $region48
        $region47: #{tpu_custom_call.1} parent=43 // pred_region
          %s571 = ssub.s32 128, 128
          %572 = vsyncadd %s563, %s571
          %s573 = smul.addr %s20, 128
          %s574 = scalar_lea.hbm %s6, %s573
          %s576 = sshll.u32 %s566, 4
          %s577 = int_to_ptr.vmem [resolvable:$true] %s576
          %579 = dma.vmem_to_hbm [thread:$0]  %s577, 128, %s574, %s563
        $region48: #{tpu_custom_call.1} parent=43 // pred_fallthru
          _
      $region44: #{tpu_custom_call.1} parent=5 // pred_fallthru
        _
      %p580 = scmp.le.s32.totalorder 2, %s15
      // Predicated region
      $region49: #{tpu_custom_call.1} parent=5 // pred_check
        %p581 = pneg %p580
      $region50: #{tpu_custom_call.1} parent=5 // pred_check_branch
        %583 = sbr.rel (%p581) target = $region52
      $region51: #{tpu_custom_call.1} parent=5 // pred_region
        %s584 = ssub.s32 %s15, 2
        // Predicated region
        $region53: #{tpu_custom_call.1} parent=51 // pred_check
          %p585 = pneg %p175
        $region54: #{tpu_custom_call.1} parent=51 // pred_check_branch
          %587 = sbr.rel (%p585) target = $region56
        $region55: #{tpu_custom_call.1} parent=51 // pred_region
          %s588 = sand.u32 %s160, 1
          %s589 = scalar_lea.sflag [#allocation3], %s588
          %s590 = sand.u32 %s160, 1
          %s591 = smul.addr %s590, 8
          %s592 = scalar_lea.vmem [#allocation2], %s591
          %593 = dma.done %s589, 128
        $region56: #{tpu_custom_call.1} parent=51 // pred_fallthru
          _
      $region52: #{tpu_custom_call.1} parent=5 // pred_fallthru
        _
    $region6: #{tpu_custom_call.1} parent=1 // loop_footer
      %s19 = sadd.s32 1, %s15
    $region7: #{tpu_custom_call.1} parent=1 // loop_footer_branch
      %14 = sbr.rel target = $region3
    $region8: #{tpu_custom_call.1} parent=1 // loop_exit
      _
    %594 = vsyncpa [#allocation3], 1
    %s595 = scalar_lea.sflag [#allocation3], 1
    %596 = vsyncpa %s595, 1

</llo_original>
